<compile_context>
chip_gen: v6e
topology: v6e:2x2x1
jax: 0.10.0
libtpu: 0.0.40
codegen_flags: <defaults>
</compile_context>

<pallas_src>
import jax
import jax.numpy as jnp
from jax.experimental import pallas as pl
from jax.experimental.pallas import tpu as pltpu


def _channel_attention_kernel(x_ref, w1_ref, b1_ref, w2_ref, b2_ref, out_ref):
    x = x_ref[...]                                   # (TB, C, HW) float32
    tb, _, hw = x.shape

    # ---- Global avg / max pool over the spatial dim ----------------------
    # Block last dim == logical HW, so Mosaic masks the partial lane tile in
    # both reductions (sum neutral 0, max neutral -inf): no padding tricks.
    avg = jnp.sum(x, axis=-1) * (1.0 / hw)           # (TB, C)
    mx = jnp.max(x, axis=-1)                         # (TB, C)
    # TODO(synk): on v7x a fused chunked fori_loop carrying running sum+max
    # would halve the pooling VMEM reads; on v5e/v6e this is hidden under DMA.

    # ---- Shared 2-layer MLP, avg & max stacked into one matmul -----------
    #   fc(avg) + fc(max) = (relu(avg@W1+b1) + relu(max@W1+b1)) @ W2 + 2*b2
    w1 = w1_ref[...]                                 # (C, hidden)
    b1 = b1_ref[...]                                 # (1, hidden)
    w2 = w2_ref[...]                                 # (hidden, C)
    b2 = b2_ref[...]                                 # (1, C)

    pooled = jnp.concatenate([avg, mx], axis=0)      # (2*TB, C)
    h = jnp.maximum(
        jnp.dot(pooled, w1, preferred_element_type=jnp.float32) + b1, 0.0)
    y = jnp.dot(h, w2, preferred_element_type=jnp.float32)   # (2*TB, C)
    att = y[:tb] + y[tb:] + 2.0 * b2                 # (TB, C)
    gate = jax.nn.sigmoid(att)

    # ---- Channel-wise rescale ---------------------------------------------
    out_ref[...] = x * gate[:, :, None]


def _vmem_capacity_bytes():
    """Physical VMEM per core; conservative 64 MiB fallback (v7x)."""
    try:
        info = pltpu.get_tpu_info()
        cap = getattr(info, "vmem_capacity_bytes", None)
        if cap:
            return int(cap)
    except Exception:
        pass
    return 64 * 1024 * 1024


def _pick_tb(batch, per_batch_vmem, target_block_bytes):
    """Largest divisor of `batch` whose block fits the budget; prefer >=4
    grid steps as long as blocks stay >= ~2 MiB."""
    divisors = [d for d in range(1, batch + 1) if batch % d == 0]
    feasible = [d for d in divisors if d * per_batch_vmem <= target_block_bytes]
    if not feasible:
        # TODO(synk): two-pass fallback (HW-tiled pooling kernel producing the
        # (B, C) gate, then an HW-tiled rescale kernel) for feature maps where
        # even one batch's (C, HW) slab exceeds the per-block VMEM budget.
        return 1
    tb = max(feasible)
    if batch // tb < 4:
        better = [d for d in feasible
                  if batch // d >= 4 and d * per_batch_vmem >= 2 * 1024 * 1024]
        if better:
            tb = max(better)
    return tb


def channel_attention(x_nchw, w1_t, b1, w2_t, b2):
    """x_nchw: (B, C, H, W) float32. Returns (B, C, H, W)."""
    B, C, H, W = x_nchw.shape
    HW = H * W
    hidden = w1_t.shape[1]

    x_flat = x_nchw.reshape(B, C, HW)      # pure view, no HBM traffic

    # VMEM footprint of one batch's (C, HW) slab (tile-padded to (8, 128)).
    c_pad = ((C + 7) // 8) * 8
    hw_pad = ((HW + 127) // 128) * 128
    per_batch_vmem = c_pad * hw_pad * 4

    vmem_cap = _vmem_capacity_bytes()
    if vmem_cap >= 100 * 1024 * 1024:      # v5e / v6e: 128 MiB physical VMEM
        target_block_bytes = 12 * 1024 * 1024
        vmem_ceiling = 80 * 1024 * 1024
    else:                                  # v7x: 64 MiB physical VMEM
        target_block_bytes = 6 * 1024 * 1024
        vmem_ceiling = 44 * 1024 * 1024

    TB = _pick_tb(B, per_batch_vmem, target_block_bytes)
    block_bytes = TB * per_batch_vmem
    vmem_limit = int(min(vmem_ceiling,
                         max(32 * 1024 * 1024, 5 * block_bytes + (4 << 20))))

    b1_2d = b1.reshape(1, hidden)
    b2_2d = b2.reshape(1, C)

    out_flat = pl.pallas_call(
        _channel_attention_kernel,
        out_shape=jax.ShapeDtypeStruct((B, C, HW), jnp.float32),
        grid_spec=pltpu.PrefetchScalarGridSpec(
            num_scalar_prefetch=0,
            grid=(B // TB,),
            in_specs=[
                pl.BlockSpec((TB, C, HW), lambda b: (b, 0, 0)),   # x
                pl.BlockSpec((C, hidden), lambda b: (0, 0)),      # W1^T
                pl.BlockSpec((1, hidden), lambda b: (0, 0)),      # b1
                pl.BlockSpec((hidden, C), lambda b: (0, 0)),      # W2^T
                pl.BlockSpec((1, C), lambda b: (0, 0)),           # b2
            ],
            out_specs=pl.BlockSpec((TB, C, HW), lambda b: (b, 0, 0)),
        ),
        compiler_params=pltpu.CompilerParams(
            dimension_semantics=("parallel",),
            vmem_limit_bytes=vmem_limit),
    )(x_flat, w1_t, b1_2d, w2_t, b2_2d)

    return out_flat.reshape(B, C, H, W)


def reference(x, w1_t, b1, w2_t, b2):
    avg = jnp.mean(x, axis=(2, 3))
    mx = jnp.max(x, axis=(2, 3))

    def fc(v):
        h = jnp.maximum(v @ w1_t + b1, 0.0)
        return h @ w2_t + b2

    gate = jax.nn.sigmoid(fc(avg) + fc(mx))
    return x * gate[:, :, None, None]


if __name__ == "__main__":
    def run_case(B, C, H, W, reduction_ratio, key):
        hidden = C // reduction_ratio
        kx, k1, k2, k3, k4 = jax.random.split(key, 5)
        x = jax.random.normal(kx, (B, C, H, W), dtype=jnp.float32)
        # nn.Linear(C, hidden): weight (hidden, C); nn.Linear(hidden, C):
        # weight (C, hidden). Stored pre-transposed so the kernel does v @ W^T.
        w1_t = jax.random.normal(k1, (C, hidden), dtype=jnp.float32) * 0.1
        b1 = jax.random.normal(k2, (hidden,), dtype=jnp.float32) * 0.1
        w2_t = jax.random.normal(k3, (hidden, C), dtype=jnp.float32) * 0.1
        b2 = jax.random.normal(k4, (C,), dtype=jnp.float32) * 0.1

        out = jax.block_until_ready(channel_attention(x, w1_t, b1, w2_t, b2))
        ref = jax.block_until_ready(reference(x, w1_t, b1, w2_t, b2))
        assert out.shape == x.shape
        err = jnp.max(jnp.abs(out - ref))
        assert jnp.allclose(out, ref, atol=1e-5, rtol=1e-5), f"max err {err}"

    root = jax.random.PRNGKey(0)
    ka, kb = jax.random.split(root)
    run_case(2, 64, 16, 16, 16, ka)   # HW = 256 (lane-aligned)
    run_case(3, 32, 14, 14, 8, kb)    # HW = 196 (non-aligned) + odd batch
    print("KERNEL_OK")
</pallas_src>

<mosaic_0001>
module attributes {stable_mosaic.version = 11 : i64} {
  func.func @_channel_attention_kernel(%arg0: i32, %arg1: memref<2x64x256xf32, #tpu.memory_space<vmem>>, %arg2: memref<64x4xf32, #tpu.memory_space<vmem>>, %arg3: memref<1x4xf32, #tpu.memory_space<vmem>>, %arg4: memref<4x64xf32, #tpu.memory_space<vmem>>, %arg5: memref<1x64xf32, #tpu.memory_space<vmem>>, %arg6: memref<2x64x256xf32, #tpu.memory_space<vmem>>) attributes {dimension_semantics = [#tpu.dimension_semantics<parallel>], iteration_bounds = array<i64: 1>, scalar_prefetch = 0 : i64, scratch_operands = 0 : i64, tpu.core_type = #tpu.core_type<tc>, window_params = [{transform_indices = @transform_0, window_bounds = array<i64: 2, 64, 256>}, {pipeline_mode = #tpu.pipeline_mode<synchronous>, transform_indices = @transform_1, window_bounds = array<i64: 64, 4>}, {pipeline_mode = #tpu.pipeline_mode<synchronous>, transform_indices = @transform_2, window_bounds = array<i64: 1, 4>}, {pipeline_mode = #tpu.pipeline_mode<synchronous>, transform_indices = @transform_3, window_bounds = array<i64: 4, 64>}, {pipeline_mode = #tpu.pipeline_mode<synchronous>, transform_indices = @transform_4, window_bounds = array<i64: 1, 64>}, {transform_indices = @transform_5, window_bounds = array<i64: 2, 64, 256>}]} {
    %c0 = arith.constant 0 : index
    %c0_0 = arith.constant 0 : index
    %c0_1 = arith.constant 0 : index
    %0 = vector.load %arg1[%c0, %c0_0, %c0_1] : memref<2x64x256xf32, #tpu.memory_space<vmem>>, vector<2x64x256xf32>
    %cst = arith.constant dense<0.000000e+00> : vector<2x64xf32>
    %1 = vector.multi_reduction <add>, %0, %cst [2] : vector<2x64x256xf32> to vector<2x64xf32>
    %cst_2 = arith.constant 3.906250e-03 : f32
    %2 = vector.broadcast %cst_2 : f32 to vector<2x64xf32>
    %3 = arith.mulf %1, %2 : vector<2x64xf32>
    %cst_3 = arith.constant dense<0xFF800000> : vector<2x64xf32>
    %4 = vector.multi_reduction <maximumf>, %0, %cst_3 [2] : vector<2x64x256xf32> to vector<2x64xf32>
    %c0_4 = arith.constant 0 : index
    %c0_5 = arith.constant 0 : index
    %5 = vector.load %arg2[%c0_4, %c0_5] : memref<64x4xf32, #tpu.memory_space<vmem>>, vector<64x4xf32>
    %c0_6 = arith.constant 0 : index
    %c0_7 = arith.constant 0 : index
    %6 = vector.load %arg3[%c0_6, %c0_7] : memref<1x4xf32, #tpu.memory_space<vmem>>, vector<1x4xf32>
    %c0_8 = arith.constant 0 : index
    %c0_9 = arith.constant 0 : index
    %7 = vector.load %arg4[%c0_8, %c0_9] : memref<4x64xf32, #tpu.memory_space<vmem>>, vector<4x64xf32>
    %c0_10 = arith.constant 0 : index
    %c0_11 = arith.constant 0 : index
    %8 = vector.load %arg5[%c0_10, %c0_11] : memref<1x64xf32, #tpu.memory_space<vmem>>, vector<1x64xf32>
    %9 = tpu.concatenate %3, %4 in 0 : vector<2x64xf32>, vector<2x64xf32> -> vector<4x64xf32>
    %cst_12 = arith.constant dense<0.000000e+00> : vector<4x4xf32>
    %10 = tpu.matmul %9, %5, %cst_12 {dimension_numbers = #tpu.dot_dimension_numbers<[1], [0], [0], [1], [0, 0, 1, 1], [], []>} : vector<4x64xf32>, vector<64x4xf32>, vector<4x4xf32> -> vector<4x4xf32>
    %11 = vector.broadcast %6 : vector<1x4xf32> to vector<4x4xf32>
    %12 = arith.addf %10, %11 : vector<4x4xf32>
    %cst_13 = arith.constant 0.000000e+00 : f32
    %13 = vector.broadcast %cst_13 : f32 to vector<4x4xf32>
    %14 = arith.maximumf %12, %13 : vector<4x4xf32>
    %cst_14 = arith.constant dense<0.000000e+00> : vector<4x64xf32>
    %15 = tpu.matmul %14, %7, %cst_14 {dimension_numbers = #tpu.dot_dimension_numbers<[1], [0], [0], [1], [0, 0, 1, 1], [], []>} : vector<4x4xf32>, vector<4x64xf32>, vector<4x64xf32> -> vector<4x64xf32>
    %16 = vector.extract_strided_slice %15 {offsets = [0, 0], sizes = [2, 64], strides = [1, 1]} : vector<4x64xf32> to vector<2x64xf32>
    %17 = vector.extract_strided_slice %15 {offsets = [2, 0], sizes = [2, 64], strides = [1, 1]} : vector<4x64xf32> to vector<2x64xf32>
    %18 = arith.addf %16, %17 : vector<2x64xf32>
    %cst_15 = arith.constant 2.000000e+00 : f32
    %19 = vector.broadcast %cst_15 : f32 to vector<1x64xf32>
    %20 = arith.mulf %19, %8 : vector<1x64xf32>
    %21 = vector.broadcast %20 : vector<1x64xf32> to vector<2x64xf32>
    %22 = arith.addf %18, %21 : vector<2x64xf32>
    %23 = arith.negf %22 : vector<2x64xf32>
    %24 = math.exp %23 : vector<2x64xf32>
    %cst_16 = arith.constant 1.000000e+00 : f32
    %25 = vector.broadcast %cst_16 : f32 to vector<2x64xf32>
    %26 = arith.addf %25, %24 : vector<2x64xf32>
    %27 = arith.divf %25, %26 : vector<2x64xf32>
    %28 = vector.shape_cast %27 : vector<2x64xf32> to vector<2x64x1xf32>
    %29 = vector.broadcast %28 : vector<2x64x1xf32> to vector<2x64x256xf32>
    %30 = arith.mulf %0, %29 : vector<2x64x256xf32>
    %c0_17 = arith.constant 0 : index
    %c0_18 = arith.constant 0 : index
    %c0_19 = arith.constant 0 : index
    %31 = vector.load %arg6[%c0_17, %c0_18, %c0_19] : memref<2x64x256xf32, #tpu.memory_space<vmem>>, vector<2x64x256xf32>
    tpu.vector_store %arg6[%c0_17, %c0_18, %c0_19], %30 {strides = array<i32>} : memref<2x64x256xf32, #tpu.memory_space<vmem>>, vector<2x64x256xf32>,
    return
  }
  func.func @transform_0(%arg0: i32) -> (i32, i32, i32) {
    %c0_i32 = arith.constant 0 : i32
    %c0_i32_0 = arith.constant 0 : i32
    %c0_i32_1 = arith.constant 0 : i32
    return %arg0, %c0_i32, %c0_i32_0 : i32, i32, i32
  }
  func.func @transform_1(%arg0: i32) -> (i32, i32) {
    %c0_i32 = arith.constant 0 : i32
    %c0_i32_0 = arith.constant 0 : i32
    %c0_i32_1 = arith.constant 0 : i32
    return %c0_i32, %c0_i32_0 : i32, i32
  }
  func.func @transform_2(%arg0: i32) -> (i32, i32) {
    %c0_i32 = arith.constant 0 : i32
    %c0_i32_0 = arith.constant 0 : i32
    %c0_i32_1 = arith.constant 0 : i32
    return %c0_i32, %c0_i32_0 : i32, i32
  }
  func.func @transform_3(%arg0: i32) -> (i32, i32) {
    %c0_i32 = arith.constant 0 : i32
    %c0_i32_0 = arith.constant 0 : i32
    %c0_i32_1 = arith.constant 0 : i32
    return %c0_i32, %c0_i32_0 : i32, i32
  }
  func.func @transform_4(%arg0: i32) -> (i32, i32) {
    %c0_i32 = arith.constant 0 : i32
    %c0_i32_0 = arith.constant 0 : i32
    %c0_i32_1 = arith.constant 0 : i32
    return %c0_i32, %c0_i32_0 : i32, i32
  }
  func.func @transform_5(%arg0: i32) -> (i32, i32, i32) {
    %c0_i32 = arith.constant 0 : i32
    %c0_i32_0 = arith.constant 0 : i32
    %c0_i32_1 = arith.constant 0 : i32
    return %arg0, %c0_i32, %c0_i32_0 : i32, i32, i32
  }
}

</mosaic_0001>

<llo_original>
// kernel: tpu_custom_call.1
$region0: #{tpu_custom_call.1}
  #allocation0 [shape = 'u32[]', space=smem, size = 0x4, offset = 0x4, fixed_abs, tag = 'smem constant byte address 0x4 - core index']
  #allocation1 [shape = 'u32[144,128]{1,0:T(1,128)}', space=vmem, size = 0x12000, scoped, tag = 'internal scratch']
  %s0 = inlined_call_operand.hbm [shape: f32[2,64,256], index: 0, kind: input, shape index: {}]
  %s1 = inlined_call_operand.vmem [shape: f32[64,4], index: 1, kind: input, shape index: {}]
  %s2 = inlined_call_operand.vmem [shape: f32[1,4], index: 2, kind: input, shape index: {}]
  %s3 = inlined_call_operand.vmem [shape: f32[4,64], index: 3, kind: input, shape index: {}]
  %s4 = inlined_call_operand.vmem [shape: f32[1,64], index: 4, kind: input, shape index: {}]
  %s5 = inlined_call_operand.hbm [shape: f32[2,64,256], index: 5, kind: output, shape index: {}]
  %s6 = sld [smem:[#allocation0]]
  $region34: #{tpu_custom_call.1} parent=0
    _
  %s8 = ssub.s32 1, %s6
  %s9 = scalar_select 0, %s8, %s6
  $region1: #{tpu_custom_call.1} parent=0
    #allocation2 [shape = 'u8[131072]{0}', space=vmem, size = 0x20000, scoped, tag = 'input window, operand 0, single buffered']
    #allocation3 [shape = 's32[1]{0}', space=sflag, size = 0x4, scoped, tag = 'scoped memory for tpu_custom_call.1']
    #allocation4 [shape = 's32[1]{0}', space=sflag, size = 0x4, scoped, tag = 'scoped memory for tpu_custom_call.1']
    #allocation5 [shape = 'u8[131072]{0}', space=vmem, size = 0x20000, scoped, tag = 'output window, operand 0, single buffered']
    %10 = vsyncpa [#allocation3], 0
    %11 = vsyncpa [#allocation4], 0
    // Predicated region
    $region2: #{tpu_custom_call.1} parent=1 // pred_check
      _
    $region3: #{tpu_custom_call.1} parent=1 // pred_check_branch
      %13 = sbr.rel (0) target = $region5
    $region4: #{tpu_custom_call.1} parent=1 // pred_region
      %s15 = ssub.s32 4096, 4096
      %16 = vsyncadd [#allocation3], %s15
      %s17 = sshll.u32 [#allocation2], 4
      %s18 = int_to_ptr.vmem [resolvable:$true] %s17
      %23 = dma.hbm_to_vmem [thread:$0]  %s0, 4096, %s18, [#allocation3], 256, 256, 16
    $region5: #{tpu_custom_call.1} parent=1 // pred_fallthru
      _
    // Predicated region
    $region6: #{tpu_custom_call.1} parent=1 // pred_check
      _
    $region7: #{tpu_custom_call.1} parent=1 // pred_check_branch
      %25 = sbr.rel (0) target = $region9
    $region8: #{tpu_custom_call.1} parent=1 // pred_region
      _
    $region9: #{tpu_custom_call.1} parent=1 // pred_fallthru
      _
    // Predicated region
    $region10: #{tpu_custom_call.1} parent=1 // pred_check
      _
    $region11: #{tpu_custom_call.1} parent=1 // pred_check_branch
      %27 = sbr.rel (0) target = $region13
    $region12: #{tpu_custom_call.1} parent=1 // pred_region
      _
    $region13: #{tpu_custom_call.1} parent=1 // pred_fallthru
      _
    // Predicated region
    $region14: #{tpu_custom_call.1} parent=1 // pred_check
      _
    $region15: #{tpu_custom_call.1} parent=1 // pred_check_branch
      %29 = sbr.rel (0) target = $region17
    $region16: #{tpu_custom_call.1} parent=1 // pred_region
      _
    $region17: #{tpu_custom_call.1} parent=1 // pred_fallthru
      _
    // Predicated region
    $region18: #{tpu_custom_call.1} parent=1 // pred_check
      _
    $region19: #{tpu_custom_call.1} parent=1 // pred_check_branch
      %31 = sbr.rel (0) target = $region21
    $region20: #{tpu_custom_call.1} parent=1 // pred_region
      _
    $region21: #{tpu_custom_call.1} parent=1 // pred_fallthru
      _
    // Predicated region
    $region22: #{tpu_custom_call.1} parent=1 // pred_check
      _
    $region23: #{tpu_custom_call.1} parent=1 // pred_check_branch
      %33 = sbr.rel (0) target = $region25
    $region24: #{tpu_custom_call.1} parent=1 // pred_region
      %34 = dma.done [#allocation3], 4096
    $region25: #{tpu_custom_call.1} parent=1 // pred_fallthru
      _
    %v35 = vld [vmem:[#allocation2] sm:$0xff]
    %v36 = vld [vmem:[#allocation2 + $0x8] sm:$0xff]
    %v37 = vld [vmem:[#allocation2 + $0x10] sm:$0xff]
    %v38 = vld [vmem:[#allocation2 + $0x18] sm:$0xff]
    %v39 = vld [vmem:[#allocation2 + $0x20] sm:$0xff]
    %v40 = vld [vmem:[#allocation2 + $0x28] sm:$0xff]
    %v41 = vld [vmem:[#allocation2 + $0x30] sm:$0xff]
    %v42 = vld [vmem:[#allocation2 + $0x38] sm:$0xff]
    %v43 = vld [vmem:[#allocation2 + $0x40] sm:$0xff]
    %v44 = vld [vmem:[#allocation2 + $0x48] sm:$0xff]
    %v45 = vld [vmem:[#allocation2 + $0x50] sm:$0xff]
    %v46 = vld [vmem:[#allocation2 + $0x58] sm:$0xff]
    %v47 = vld [vmem:[#allocation2 + $0x60] sm:$0xff]
    %v48 = vld [vmem:[#allocation2 + $0x68] sm:$0xff]
    %v49 = vld [vmem:[#allocation2 + $0x70] sm:$0xff]
    %v50 = vld [vmem:[#allocation2 + $0x78] sm:$0xff]
    %v51 = vld [vmem:[#allocation2 + $0x80] sm:$0xff]
    %v52 = vld [vmem:[#allocation2 + $0x88] sm:$0xff]
    %v53 = vld [vmem:[#allocation2 + $0x90] sm:$0xff]
    %v54 = vld [vmem:[#allocation2 + $0x98] sm:$0xff]
    %v55 = vld [vmem:[#allocation2 + $0xa0] sm:$0xff]
    %v56 = vld [vmem:[#allocation2 + $0xa8] sm:$0xff]
    %v57 = vld [vmem:[#allocation2 + $0xb0] sm:$0xff]
    %v58 = vld [vmem:[#allocation2 + $0xb8] sm:$0xff]
    %v59 = vld [vmem:[#allocation2 + $0xc0] sm:$0xff]
    %v60 = vld [vmem:[#allocation2 + $0xc8] sm:$0xff]
    %v61 = vld [vmem:[#allocation2 + $0xd0] sm:$0xff]
    %v62 = vld [vmem:[#allocation2 + $0xd8] sm:$0xff]
    %v63 = vld [vmem:[#allocation2 + $0xe0] sm:$0xff]
    %v64 = vld [vmem:[#allocation2 + $0xe8] sm:$0xff]
    %v65 = vld [vmem:[#allocation2 + $0xf0] sm:$0xff]
    %v66 = vld [vmem:[#allocation2 + $0xf8] sm:$0xff]
    %v67 = vadd.f32 %v35, %v36
    %68 = vadd.xlane.f32.xlu0 %v67
    %v69 = vpop.xlane.xlu0 %68
    %v70 = vadd.f32 %v37, %v38
    %71 = vadd.xlane.f32.xlu0 %v70
    %v72 = vpop.xlane.xlu0 %71
    %v73 = vadd.f32 %v39, %v40
    %74 = vadd.xlane.f32.xlu0 %v73
    %v75 = vpop.xlane.xlu0 %74
    %v76 = vadd.f32 %v41, %v42
    %77 = vadd.xlane.f32.xlu0 %v76
    %v78 = vpop.xlane.xlu0 %77
    %v79 = vadd.f32 %v43, %v44
    %80 = vadd.xlane.f32.xlu0 %v79
    %v81 = vpop.xlane.xlu0 %80
    %v82 = vadd.f32 %v45, %v46
    %83 = vadd.xlane.f32.xlu0 %v82
    %v84 = vpop.xlane.xlu0 %83
    %v85 = vadd.f32 %v47, %v48
    %86 = vadd.xlane.f32.xlu0 %v85
    %v87 = vpop.xlane.xlu0 %86
    %v88 = vadd.f32 %v49, %v50
    %89 = vadd.xlane.f32.xlu0 %v88
    %v90 = vpop.xlane.xlu0 %89
    %v91 = vadd.f32 %v51, %v52
    %92 = vadd.xlane.f32.xlu0 %v91
    %v93 = vpop.xlane.xlu0 %92
    %v94 = vadd.f32 %v53, %v54
    %95 = vadd.xlane.f32.xlu0 %v94
    %v96 = vpop.xlane.xlu0 %95
    %v97 = vadd.f32 %v55, %v56
    %98 = vadd.xlane.f32.xlu0 %v97
    %v99 = vpop.xlane.xlu0 %98
    %v100 = vadd.f32 %v57, %v58
    %101 = vadd.xlane.f32.xlu0 %v100
    %v102 = vpop.xlane.xlu0 %101
    %v103 = vadd.f32 %v59, %v60
    %104 = vadd.xlane.f32.xlu0 %v103
    %v105 = vpop.xlane.xlu0 %104
    %v106 = vadd.f32 %v61, %v62
    %107 = vadd.xlane.f32.xlu0 %v106
    %v108 = vpop.xlane.xlu0 %107
    %v109 = vadd.f32 %v63, %v64
    %110 = vadd.xlane.f32.xlu0 %v109
    %v111 = vpop.xlane.xlu0 %110
    %v112 = vadd.f32 %v65, %v66
    %113 = vadd.xlane.f32.xlu0 %v112
    %v114 = vpop.xlane.xlu0 %113
    %v115 = vmul.f32 %v69, 0.00390625
    %v116 = vmul.f32 %v72, 0.00390625
    %v117 = vmul.f32 %v75, 0.00390625
    %v118 = vmul.f32 %v78, 0.00390625
    %v119 = vmul.f32 %v81, 0.00390625
    %v120 = vmul.f32 %v84, 0.00390625
    %v121 = vmul.f32 %v87, 0.00390625
    %v122 = vmul.f32 %v90, 0.00390625
    %v123 = vmul.f32 %v93, 0.00390625
    %v124 = vmul.f32 %v96, 0.00390625
    %v125 = vmul.f32 %v99, 0.00390625
    %v126 = vmul.f32 %v102, 0.00390625
    %v127 = vmul.f32 %v105, 0.00390625
    %v128 = vmul.f32 %v108, 0.00390625
    %v129 = vmul.f32 %v111, 0.00390625
    %v130 = vmul.f32 %v114, 0.00390625
    %v131 = vmax.f32 %v35, %v36
    %132 = vmax.xlane.f32.xlu0 %v131
    %v133 = vpop.xlane.xlu0 %132
    %v134 = vmax.f32 %v37, %v38
    %135 = vmax.xlane.f32.xlu0 %v134
    %v136 = vpop.xlane.xlu0 %135
    %v137 = vmax.f32 %v39, %v40
    %138 = vmax.xlane.f32.xlu0 %v137
    %v139 = vpop.xlane.xlu0 %138
    %v140 = vmax.f32 %v41, %v42
    %141 = vmax.xlane.f32.xlu0 %v140
    %v142 = vpop.xlane.xlu0 %141
    %v143 = vmax.f32 %v43, %v44
    %144 = vmax.xlane.f32.xlu0 %v143
    %v145 = vpop.xlane.xlu0 %144
    %v146 = vmax.f32 %v45, %v46
    %147 = vmax.xlane.f32.xlu0 %v146
    %v148 = vpop.xlane.xlu0 %147
    %v149 = vmax.f32 %v47, %v48
    %150 = vmax.xlane.f32.xlu0 %v149
    %v151 = vpop.xlane.xlu0 %150
    %v152 = vmax.f32 %v49, %v50
    %153 = vmax.xlane.f32.xlu0 %v152
    %v154 = vpop.xlane.xlu0 %153
    %v155 = vmax.f32 %v51, %v52
    %156 = vmax.xlane.f32.xlu0 %v155
    %v157 = vpop.xlane.xlu0 %156
    %v158 = vmax.f32 %v53, %v54
    %159 = vmax.xlane.f32.xlu0 %v158
    %v160 = vpop.xlane.xlu0 %159
    %v161 = vmax.f32 %v55, %v56
    %162 = vmax.xlane.f32.xlu0 %v161
    %v163 = vpop.xlane.xlu0 %162
    %v164 = vmax.f32 %v57, %v58
    %165 = vmax.xlane.f32.xlu0 %v164
    %v166 = vpop.xlane.xlu0 %165
    %v167 = vmax.f32 %v59, %v60
    %168 = vmax.xlane.f32.xlu0 %v167
    %v169 = vpop.xlane.xlu0 %168
    %v170 = vmax.f32 %v61, %v62
    %171 = vmax.xlane.f32.xlu0 %v170
    %v172 = vpop.xlane.xlu0 %171
    %v173 = vmax.f32 %v63, %v64
    %174 = vmax.xlane.f32.xlu0 %v173
    %v175 = vpop.xlane.xlu0 %174
    %v176 = vmax.f32 %v65, %v66
    %177 = vmax.xlane.f32.xlu0 %v176
    %v178 = vpop.xlane.xlu0 %177
    %v179 = vld [vmem:[%s1] sm:$0xff]
    %v180 = vld [vmem:[%s1 + $0x8] sm:$0xff]
    %v181 = vld [vmem:[%s1 + $0x10] sm:$0xff]
    %v182 = vld [vmem:[%s1 + $0x18] sm:$0xff]
    %v183 = vld [vmem:[%s1 + $0x20] sm:$0xff]
    %v184 = vld [vmem:[%s1 + $0x28] sm:$0xff]
    %v185 = vld [vmem:[%s1 + $0x30] sm:$0xff]
    %v186 = vld [vmem:[%s1 + $0x38] sm:$0xff]
    %v187 = vld [vmem:[%s2] sm:$0x1]
    %v188 = vld [vmem:[%s3] sm:$0xf]
    %v189 = vld [vmem:[%s4] sm:$0x1]
    %v206 = vlaneseq
    %v207 = vand.u32 %v206, 127
    %v208 = vlaneseq
    %v209 = vshrl.u32 %v208, 7
    %v210 = vsub.s32 %v207, %v209
    %v211 = vrot.slane %v115, %v210
    %v212 = vadd.s32 %v207, 4294967288
    %v213 = vlaneseq
    %v214 = vshrl.u32 %v213, 7
    %v215 = vsub.s32 %v212, %v214
    %v216 = vrot.slane %v116, %v215
    %vm217 = vcmask 130112
    %v218 = vsel %vm217, %v216, %v211
    %v219 = vadd.s32 %v207, 4294967280
    %v220 = vlaneseq
    %v221 = vshrl.u32 %v220, 7
    %v222 = vsub.s32 %v219, %v221
    %v223 = vrot.slane %v117, %v222
    %vm224 = vcmask 195712
    %v225 = vsel %vm224, %v223, %v218
    %v226 = vadd.s32 %v207, 4294967272
    %v227 = vlaneseq
    %v228 = vshrl.u32 %v227, 7
    %v229 = vsub.s32 %v226, %v228
    %v230 = vrot.slane %v118, %v229
    %vm231 = vcmask 261312
    %v232 = vsel %vm231, %v230, %v225
    %v233 = vadd.s32 %v207, 4294967264
    %v234 = vlaneseq
    %v235 = vshrl.u32 %v234, 7
    %v236 = vsub.s32 %v233, %v235
    %v237 = vrot.slane %v119, %v236
    %vm238 = vcmask 326912
    %v239 = vsel %vm238, %v237, %v232
    %v240 = vadd.s32 %v207, 4294967256
    %v241 = vlaneseq
    %v242 = vshrl.u32 %v241, 7
    %v243 = vsub.s32 %v240, %v242
    %v244 = vrot.slane %v120, %v243
    %vm245 = vcmask 392512
    %v246 = vsel %vm245, %v244, %v239
    %v247 = vadd.s32 %v207, 4294967248
    %v248 = vlaneseq
    %v249 = vshrl.u32 %v248, 7
    %v250 = vsub.s32 %v247, %v249
    %v251 = vrot.slane %v121, %v250
    %vm252 = vcmask 458112
    %v253 = vsel %vm252, %v251, %v246
    %v254 = vadd.s32 %v207, 4294967240
    %v255 = vlaneseq
    %v256 = vshrl.u32 %v255, 7
    %v257 = vsub.s32 %v254, %v256
    %v258 = vrot.slane %v122, %v257
    %vm259 = vcmask 523712
    %v260 = vsel %vm259, %v258, %v253
    %v261 = vlaneseq
    %v262 = vshrl.u32 %v261, 7
    %v263 = vsub.s32 %v207, %v262
    %v264 = vrot.slane %v123, %v263
    %v265 = vlaneseq
    %v266 = vshrl.u32 %v265, 7
    %v267 = vsub.s32 %v212, %v266
    %v268 = vrot.slane %v124, %v267
    %v269 = vsel %vm217, %v268, %v264
    %v270 = vlaneseq
    %v271 = vshrl.u32 %v270, 7
    %v272 = vsub.s32 %v219, %v271
    %v273 = vrot.slane %v125, %v272
    %v274 = vsel %vm224, %v273, %v269
    %v275 = vlaneseq
    %v276 = vshrl.u32 %v275, 7
    %v277 = vsub.s32 %v226, %v276
    %v278 = vrot.slane %v126, %v277
    %v279 = vsel %vm231, %v278, %v274
    %v280 = vlaneseq
    %v281 = vshrl.u32 %v280, 7
    %v282 = vsub.s32 %v233, %v281
    %v283 = vrot.slane %v127, %v282
    %v284 = vsel %vm238, %v283, %v279
    %v285 = vlaneseq
    %v286 = vshrl.u32 %v285, 7
    %v287 = vsub.s32 %v240, %v286
    %v288 = vrot.slane %v128, %v287
    %v289 = vsel %vm245, %v288, %v284
    %v290 = vlaneseq
    %v291 = vshrl.u32 %v290, 7
    %v292 = vsub.s32 %v247, %v291
    %v293 = vrot.slane %v129, %v292
    %v294 = vsel %vm252, %v293, %v289
    %v295 = vlaneseq
    %v296 = vshrl.u32 %v295, 7
    %v297 = vsub.s32 %v254, %v296
    %v298 = vrot.slane %v130, %v297
    %v299 = vsel %vm259, %v298, %v294
    %vm300 = vcmask 1041409
    %v301 = vsel %vm300, %v299, %v260
    %v319 = vlaneseq
    %v320 = vshrl.u32 %v319, 7
    %v321 = vsub.s32 %v207, %v320
    %v322 = vrot.slane %v133, %v321
    %v323 = vlaneseq
    %v324 = vshrl.u32 %v323, 7
    %v325 = vsub.s32 %v212, %v324
    %v326 = vrot.slane %v136, %v325
    %v327 = vsel %vm217, %v326, %v322
    %v328 = vlaneseq
    %v329 = vshrl.u32 %v328, 7
    %v330 = vsub.s32 %v219, %v329
    %v331 = vrot.slane %v139, %v330
    %v332 = vsel %vm224, %v331, %v327
    %v333 = vlaneseq
    %v334 = vshrl.u32 %v333, 7
    %v335 = vsub.s32 %v226, %v334
    %v336 = vrot.slane %v142, %v335
    %v337 = vsel %vm231, %v336, %v332
    %v338 = vlaneseq
    %v339 = vshrl.u32 %v338, 7
    %v340 = vsub.s32 %v233, %v339
    %v341 = vrot.slane %v145, %v340
    %v342 = vsel %vm238, %v341, %v337
    %v343 = vlaneseq
    %v344 = vshrl.u32 %v343, 7
    %v345 = vsub.s32 %v240, %v344
    %v346 = vrot.slane %v148, %v345
    %v347 = vsel %vm245, %v346, %v342
    %v348 = vlaneseq
    %v349 = vshrl.u32 %v348, 7
    %v350 = vsub.s32 %v247, %v349
    %v351 = vrot.slane %v151, %v350
    %v352 = vsel %vm252, %v351, %v347
    %v353 = vlaneseq
    %v354 = vshrl.u32 %v353, 7
    %v355 = vsub.s32 %v254, %v354
    %v356 = vrot.slane %v154, %v355
    %v357 = vsel %vm259, %v356, %v352
    %v358 = vlaneseq
    %v359 = vshrl.u32 %v358, 7
    %v360 = vsub.s32 %v207, %v359
    %v361 = vrot.slane %v157, %v360
    %v362 = vlaneseq
    %v363 = vshrl.u32 %v362, 7
    %v364 = vsub.s32 %v212, %v363
    %v365 = vrot.slane %v160, %v364
    %v366 = vsel %vm217, %v365, %v361
    %v367 = vlaneseq
    %v368 = vshrl.u32 %v367, 7
    %v369 = vsub.s32 %v219, %v368
    %v370 = vrot.slane %v163, %v369
    %v371 = vsel %vm224, %v370, %v366
    %v372 = vlaneseq
    %v373 = vshrl.u32 %v372, 7
    %v374 = vsub.s32 %v226, %v373
    %v375 = vrot.slane %v166, %v374
    %v376 = vsel %vm231, %v375, %v371
    %v377 = vlaneseq
    %v378 = vshrl.u32 %v377, 7
    %v379 = vsub.s32 %v233, %v378
    %v380 = vrot.slane %v169, %v379
    %v381 = vsel %vm238, %v380, %v376
    %v382 = vlaneseq
    %v383 = vshrl.u32 %v382, 7
    %v384 = vsub.s32 %v240, %v383
    %v385 = vrot.slane %v172, %v384
    %v386 = vsel %vm245, %v385, %v381
    %v387 = vlaneseq
    %v388 = vshrl.u32 %v387, 7
    %v389 = vsub.s32 %v247, %v388
    %v390 = vrot.slane %v175, %v389
    %v391 = vsel %vm252, %v390, %v386
    %v392 = vlaneseq
    %v393 = vshrl.u32 %v392, 7
    %v394 = vsub.s32 %v254, %v393
    %v395 = vrot.slane %v178, %v394
    %v396 = vsel %vm259, %v395, %v391
    %vm397 = vcmask 1043459
    %v398 = vsel %vm397, %v396, %v357
    %vm400 = vcmask 1041408
    %v401 = vsel %vm400, %v301, %v398
    %v403 = vlaneseq
    %v404 = vshrl.u32 %v403, 7
    %v405 = vsub.s32 0, %v404
    %v406 = vrot.slane %v187, %v405
    %vm408 = vcmask 523264
    %v410 = vsel %vm408, %v401, 0
    %412 = vmatprep.subr.mxu0 0.0
    %413 = vmatpush1.msra.mxu0 0.0
    %414 = vmatprep.subr.mxu0 0.0
    %415 = vmatpush1.msra.mxu0 0.0
    %416 = vmatprep.subr.mxu0 0.0
    %417 = vmatpush1.msra.mxu0 0.0
    %418 = vmatprep.subr.mxu0 0.0
    %419 = vmatpush1.msra.mxu0 0.0
    %420 = vmatprep.subr.mxu0 0.0
    %421 = vmatpush1.msra.mxu0 0.0
    %422 = vmatprep.subr.mxu0 0.0
    %423 = vmatpush1.msra.mxu0 0.0
    %424 = vmatprep.subr.mxu0 0.0
    %425 = vmatpush1.msra.mxu0 0.0
    %426 = vmatprep.subr.mxu0 0.0
    %427 = vmatpush1.msra.mxu0 0.0
    %428 = vmatprep.subr.mxu0 0.0
    %429 = vmatpush1.msra.mxu0 %v186
    %430 = vmatprep.subr.mxu0 0.0
    %431 = vmatpush1.msra.mxu0 %v185
    %432 = vmatprep.subr.mxu0 0.0
    %433 = vmatpush1.msra.mxu0 %v184
    %434 = vmatprep.subr.mxu0 0.0
    %435 = vmatpush1.msra.mxu0 %v183
    %436 = vmatprep.subr.mxu0 0.0
    %437 = vmatpush1.msra.mxu0 %v182
    %438 = vmatprep.subr.mxu0 0.0
    %439 = vmatpush1.msra.mxu0 %v181
    %440 = vmatprep.subr.mxu0 0.0
    %441 = vmatpush1.msra.mxu0 %v180
    %442 = vmatprep.subr.mxu0 0.0
    %443 = vmatpush1.msra.mxu0 %v179
    %444 = vmatprep.subr.mxu0 0.0
    %445 = vmatpush2.msra.mxu0 0.0
    %446 = vmatprep.subr.mxu0 0.0
    %447 = vmatpush2.msra.mxu0 0.0
    %448 = vmatprep.subr.mxu0 0.0
    %449 = vmatpush2.msra.mxu0 0.0
    %450 = vmatprep.subr.mxu0 0.0
    %451 = vmatpush2.msra.mxu0 0.0
    %452 = vmatprep.subr.mxu0 0.0
    %453 = vmatpush2.msra.mxu0 0.0
    %454 = vmatprep.subr.mxu0 0.0
    %455 = vmatpush2.msra.mxu0 0.0
    %456 = vmatprep.subr.mxu0 0.0
    %457 = vmatpush2.msra.mxu0 0.0
    %458 = vmatprep.subr.mxu0 0.0
    %459 = vmatpush2.msra.mxu0 0.0
    %460 = vmatprep.subr.mxu0 0.0
    %461 = vmatpush2.msra.mxu0 0.0
    %462 = vmatprep.subr.mxu0 0.0
    %463 = vmatpush2.msra.mxu0 0.0
    %464 = vmatprep.subr.mxu0 0.0
    %465 = vmatpush2.msra.mxu0 0.0
    %466 = vmatprep.subr.mxu0 0.0
    %467 = vmatpush2.msra.mxu0 0.0
    %468 = vmatprep.subr.mxu0 0.0
    %469 = vmatpush2.msra.mxu0 0.0
    %470 = vmatprep.subr.mxu0 0.0
    %471 = vmatpush2.msra.mxu0 0.0
    %472 = vmatprep.subr.mxu0 0.0
    %473 = vmatpush2.msra.mxu0 0.0
    %474 = vmatprep.subr.mxu0 0.0
    %475 = vmatpush2.msra.mxu0 0.0
    %476 = vmatprep.mubr.f32.mxu0 0.0
    %477 = vmatmul.mubr.f32.gmra.mxu0 %v410
    %v478 = vpop.f32.mrf.mxu0
    %v479 = vadd.f32 %v406, %v478
    %v480 = vpop.f32.mrf.mxu0
    %481 = vdwg.mxu0
    %v482 = vmax.f32 %v479, 0.0
    %vm483 = vcmask 31744
    %v485 = vsel %vm483, %v482, 0
    %vm487 = vcmask 1043456
    %v489 = vsel %vm487, %v188, 0
    %491 = vmatprep.subr.mxu0 0.0
    %492 = vmatpush1.msra.mxu0 0.0
    %493 = vmatprep.subr.mxu0 0.0
    %494 = vmatpush1.msra.mxu0 0.0
    %495 = vmatprep.subr.mxu0 0.0
    %496 = vmatpush1.msra.mxu0 0.0
    %497 = vmatprep.subr.mxu0 0.0
    %498 = vmatpush1.msra.mxu0 0.0
    %499 = vmatprep.subr.mxu0 0.0
    %500 = vmatpush1.msra.mxu0 0.0
    %501 = vmatprep.subr.mxu0 0.0
    %502 = vmatpush1.msra.mxu0 0.0
    %503 = vmatprep.subr.mxu0 0.0
    %504 = vmatpush1.msra.mxu0 0.0
    %505 = vmatprep.subr.mxu0 0.0
    %506 = vmatpush1.msra.mxu0 0.0
    %507 = vmatprep.subr.mxu0 0.0
    %508 = vmatpush1.msra.mxu0 0.0
    %509 = vmatprep.subr.mxu0 0.0
    %510 = vmatpush1.msra.mxu0 0.0
    %511 = vmatprep.subr.mxu0 0.0
    %512 = vmatpush1.msra.mxu0 0.0
    %513 = vmatprep.subr.mxu0 0.0
    %514 = vmatpush1.msra.mxu0 0.0
    %515 = vmatprep.subr.mxu0 0.0
    %516 = vmatpush1.msra.mxu0 0.0
    %517 = vmatprep.subr.mxu0 0.0
    %518 = vmatpush1.msra.mxu0 0.0
    %519 = vmatprep.subr.mxu0 0.0
    %520 = vmatpush1.msra.mxu0 0.0
    %521 = vmatprep.subr.mxu0 0.0
    %522 = vmatpush1.msra.mxu0 %v489
    %523 = vmatprep.subr.mxu0 0.0
    %524 = vmatpush2.msra.mxu0 0.0
    %525 = vmatprep.subr.mxu0 0.0
    %526 = vmatpush2.msra.mxu0 0.0
    %527 = vmatprep.subr.mxu0 0.0
    %528 = vmatpush2.msra.mxu0 0.0
    %529 = vmatprep.subr.mxu0 0.0
    %530 = vmatpush2.msra.mxu0 0.0
    %531 = vmatprep.subr.mxu0 0.0
    %532 = vmatpush2.msra.mxu0 0.0
    %533 = vmatprep.subr.mxu0 0.0
    %534 = vmatpush2.msra.mxu0 0.0
    %535 = vmatprep.subr.mxu0 0.0
    %536 = vmatpush2.msra.mxu0 0.0
    %537 = vmatprep.subr.mxu0 0.0
    %538 = vmatpush2.msra.mxu0 0.0
    %539 = vmatprep.subr.mxu0 0.0
    %540 = vmatpush2.msra.mxu0 0.0
    %541 = vmatprep.subr.mxu0 0.0
    %542 = vmatpush2.msra.mxu0 0.0
    %543 = vmatprep.subr.mxu0 0.0
    %544 = vmatpush2.msra.mxu0 0.0
    %545 = vmatprep.subr.mxu0 0.0
    %546 = vmatpush2.msra.mxu0 0.0
    %547 = vmatprep.subr.mxu0 0.0
    %548 = vmatpush2.msra.mxu0 0.0
    %549 = vmatprep.subr.mxu0 0.0
    %550 = vmatpush2.msra.mxu0 0.0
    %551 = vmatprep.subr.mxu0 0.0
    %552 = vmatpush2.msra.mxu0 0.0
    %553 = vmatprep.subr.mxu0 0.0
    %554 = vmatpush2.msra.mxu0 0.0
    %555 = vmatprep.mubr.f32.mxu0 0.0
    %556 = vmatmul.mubr.f32.gmra.mxu0 %v485
    %v557 = vpop.f32.mrf.mxu0
    %v558 = vadd.f32 0.0, %v557
    %v559 = vpop.f32.mrf.mxu0
    %560 = vdwg.mxu0
    %v562 = vrot.slane %v558, 2
    %v564 = vadd.f32 %v558, %v562
    %v565 = vmul.f32 %v189, 2.0
    %v567 = vlaneseq
    %v568 = vshrl.u32 %v567, 7
    %v569 = vsub.s32 0, %v568
    %v570 = vrot.slane %v565, %v569
    %v572 = vadd.f32 %v564, %v570
    %v573 = vxor.u32 %v572, 2147483648
    %v574 = vmul.f32 %v573, 1.442695
    %v575 = vpow.pop %v574
    %v576 = vadd.f32 %v575, 1.0
    %v577 = vrcp.pop %v576
    %v578 = vmul.f32 1.0, %v577
    %v579 = vlaneseq
    %v580 = vshrl.u32 %v579, 7
    %v581 = vsub.s32 0, %v580
    %v582 = vrot.slane %v578, %v581
    %584 = vbcast.lane.b32.xlu0 %v582, 256
    %v585 = vpop.permute.xlu0 %584
    %s587 = sor.u32 256, 8
    %588 = vbcast.lane.b32.xlu0 %v582, %s587
    %v589 = vpop.permute.xlu0 %588
    %s591 = sor.u32 256, 16
    %592 = vbcast.lane.b32.xlu0 %v582, %s591
    %v593 = vpop.permute.xlu0 %592
    %s595 = sor.u32 256, 24
    %596 = vbcast.lane.b32.xlu0 %v582, %s595
    %v597 = vpop.permute.xlu0 %596
    %s599 = sor.u32 256, 32
    %600 = vbcast.lane.b32.xlu0 %v582, %s599
    %v601 = vpop.permute.xlu0 %600
    %s603 = sor.u32 256, 40
    %604 = vbcast.lane.b32.xlu0 %v582, %s603
    %v605 = vpop.permute.xlu0 %604
    %s607 = sor.u32 256, 48
    %608 = vbcast.lane.b32.xlu0 %v582, %s607
    %v609 = vpop.permute.xlu0 %608
    %s611 = sor.u32 256, 56
    %612 = vbcast.lane.b32.xlu0 %v582, %s611
    %v613 = vpop.permute.xlu0 %612
    %v614 = vlaneseq
    %v615 = vshrl.u32 %v614, 7
    %v616 = vsub.s32 1, %v615
    %v617 = vrot.slane %v578, %v616
    %619 = vbcast.lane.b32.xlu0 %v617, 256
    %v620 = vpop.permute.xlu0 %619
    %s622 = sor.u32 256, 8
    %623 = vbcast.lane.b32.xlu0 %v617, %s622
    %v624 = vpop.permute.xlu0 %623
    %s626 = sor.u32 256, 16
    %627 = vbcast.lane.b32.xlu0 %v617, %s626
    %v628 = vpop.permute.xlu0 %627
    %s630 = sor.u32 256, 24
    %631 = vbcast.lane.b32.xlu0 %v617, %s630
    %v632 = vpop.permute.xlu0 %631
    %s634 = sor.u32 256, 32
    %635 = vbcast.lane.b32.xlu0 %v617, %s634
    %v636 = vpop.permute.xlu0 %635
    %s638 = sor.u32 256, 40
    %639 = vbcast.lane.b32.xlu0 %v617, %s638
    %v640 = vpop.permute.xlu0 %639
    %s642 = sor.u32 256, 48
    %643 = vbcast.lane.b32.xlu0 %v617, %s642
    %v644 = vpop.permute.xlu0 %643
    %s646 = sor.u32 256, 56
    %647 = vbcast.lane.b32.xlu0 %v617, %s646
    %v648 = vpop.permute.xlu0 %647
    %v649 = vmul.f32 %v35, %v585
    %v650 = vmul.f32 %v36, %v585
    %v651 = vmul.f32 %v37, %v589
    %v652 = vmul.f32 %v38, %v589
    %v653 = vmul.f32 %v39, %v593
    %v654 = vmul.f32 %v40, %v593
    %v655 = vmul.f32 %v41, %v597
    %v656 = vmul.f32 %v42, %v597
    %v657 = vmul.f32 %v43, %v601
    %v658 = vmul.f32 %v44, %v601
    %v659 = vmul.f32 %v45, %v605
    %v660 = vmul.f32 %v46, %v605
    %v661 = vmul.f32 %v47, %v609
    %v662 = vmul.f32 %v48, %v609
    %v663 = vmul.f32 %v49, %v613
    %v664 = vmul.f32 %v50, %v613
    %v665 = vmul.f32 %v51, %v620
    %v666 = vmul.f32 %v52, %v620
    %v667 = vmul.f32 %v53, %v624
    %v668 = vmul.f32 %v54, %v624
    %v669 = vmul.f32 %v55, %v628
    %v670 = vmul.f32 %v56, %v628
    %v671 = vmul.f32 %v57, %v632
    %v672 = vmul.f32 %v58, %v632
    %v673 = vmul.f32 %v59, %v636
    %v674 = vmul.f32 %v60, %v636
    %v675 = vmul.f32 %v61, %v640
    %v676 = vmul.f32 %v62, %v640
    %v677 = vmul.f32 %v63, %v644
    %v678 = vmul.f32 %v64, %v644
    %v679 = vmul.f32 %v65, %v648
    %v680 = vmul.f32 %v66, %v648
    %681 = vst [vmem:[#allocation5] sm:$0xff] %v649
    %682 = vst [vmem:[#allocation5 + $0x8] sm:$0xff] %v650
    %683 = vst [vmem:[#allocation5 + $0x10] sm:$0xff] %v651
    %684 = vst [vmem:[#allocation5 + $0x18] sm:$0xff] %v652
    %685 = vst [vmem:[#allocation5 + $0x20] sm:$0xff] %v653
    %686 = vst [vmem:[#allocation5 + $0x28] sm:$0xff] %v654
    %687 = vst [vmem:[#allocation5 + $0x30] sm:$0xff] %v655
    %688 = vst [vmem:[#allocation5 + $0x38] sm:$0xff] %v656
    %689 = vst [vmem:[#allocation5 + $0x40] sm:$0xff] %v657
    %690 = vst [vmem:[#allocation5 + $0x48] sm:$0xff] %v658
    %691 = vst [vmem:[#allocation5 + $0x50] sm:$0xff] %v659
    %692 = vst [vmem:[#allocation5 + $0x58] sm:$0xff] %v660
    %693 = vst [vmem:[#allocation5 + $0x60] sm:$0xff] %v661
    %694 = vst [vmem:[#allocation5 + $0x68] sm:$0xff] %v662
    %695 = vst [vmem:[#allocation5 + $0x70] sm:$0xff] %v663
    %696 = vst [vmem:[#allocation5 + $0x78] sm:$0xff] %v664
    %697 = vst [vmem:[#allocation5 + $0x80] sm:$0xff] %v665
    %698 = vst [vmem:[#allocation5 + $0x88] sm:$0xff] %v666
    %699 = vst [vmem:[#allocation5 + $0x90] sm:$0xff] %v667
    %700 = vst [vmem:[#allocation5 + $0x98] sm:$0xff] %v668
    %701 = vst [vmem:[#allocation5 + $0xa0] sm:$0xff] %v669
    %702 = vst [vmem:[#allocation5 + $0xa8] sm:$0xff] %v670
    %703 = vst [vmem:[#allocation5 + $0xb0] sm:$0xff] %v671
    %704 = vst [vmem:[#allocation5 + $0xb8] sm:$0xff] %v672
    %705 = vst [vmem:[#allocation5 + $0xc0] sm:$0xff] %v673
    %706 = vst [vmem:[#allocation5 + $0xc8] sm:$0xff] %v674
    %707 = vst [vmem:[#allocation5 + $0xd0] sm:$0xff] %v675
    %708 = vst [vmem:[#allocation5 + $0xd8] sm:$0xff] %v676
    %709 = vst [vmem:[#allocation5 + $0xe0] sm:$0xff] %v677
    %710 = vst [vmem:[#allocation5 + $0xe8] sm:$0xff] %v678
    %711 = vst [vmem:[#allocation5 + $0xf0] sm:$0xff] %v679
    %712 = vst [vmem:[#allocation5 + $0xf8] sm:$0xff] %v680
    // Predicated region
    $region26: #{tpu_custom_call.1} parent=1 // pred_check
      _
    $region27: #{tpu_custom_call.1} parent=1 // pred_check_branch
      %714 = sbr.rel (0) target = $region29
    $region28: #{tpu_custom_call.1} parent=1 // pred_region
      %s716 = ssub.s32 4096, 4096
      %717 = vsyncadd [#allocation4], %s716
      %s718 = sshll.u32 [#allocation5], 4
      %s719 = int_to_ptr.vmem [resolvable:$true] %s718
      %724 = dma.vmem_to_hbm [thread:$0]  %s719, 4096, %s5, [#allocation4], 256, 256, 16
    $region29: #{tpu_custom_call.1} parent=1 // pred_fallthru
      _
    // Predicated region
    $region30: #{tpu_custom_call.1} parent=1 // pred_check
      _
    $region31: #{tpu_custom_call.1} parent=1 // pred_check_branch
      %726 = sbr.rel (0) target = $region33
    $region32: #{tpu_custom_call.1} parent=1 // pred_region
      %727 = dma.done [#allocation4], 4096
    $region33: #{tpu_custom_call.1} parent=1 // pred_fallthru
      _
    %728 = vsyncpa [#allocation3], 1
    %729 = vsyncpa [#allocation4], 1

</llo_original>
